<compile_context>
chip_gen: v5e
topology: v5e:2x2
jax: 0.10.0
libtpu: 0.0.40
codegen_flags: <defaults>
</compile_context>

<pallas_src>
import jax
import jax.numpy as jnp
from jax.experimental import pallas as pl
from jax.experimental.pallas import tpu as pltpu

_LANES = 128
_TILE_TARGET_BYTES = 8 << 20    # ~8 MiB per input per grid step
_VMEM_LIMIT_BYTES = 56 << 20    # 3 arrays x 2 buffers x 8 MiB = 48 MiB + headroom (< 64 MiB v7x)
_MIN_SPLIT_BYTES = 1 << 20      # forced extra blocks must each still move >= 1 MiB per input


def _add_kernel(a_ref, b_ref, o_ref):
    # Elementwise add on the whole VMEM tile (VPU).
    o_ref[...] = a_ref[...] + b_ref[...]


def _round_up(x: int, m: int) -> int:
    return ((x + m - 1) // m) * m


def _sublane_multiple(dtype) -> int:
    # Sub-32-bit dtypes pack along sublanes: 16-bit -> 16 rows, 8-bit -> 32 rows.
    itemsize = jnp.dtype(dtype).itemsize
    return {4: 8, 2: 16, 1: 32}.get(itemsize, 8)


def _pick_tile_rows(rows: int, row_bytes: int, sub: int) -> int:
    """Sublane-aligned tile rows targeting ~8 MiB per input per grid step."""
    target_rows = max(sub, (_TILE_TARGET_BYTES // row_bytes) // sub * sub)
    tile_rows = min(rows, target_rows)

    total_bytes = rows * row_bytes
    # Guarantee >= 4 grid steps (>= 2 per TensorCore on v7x: megacore sharding
    # + input/output DMA double-buffering) whenever each block still carries
    # >= _MIN_SPLIT_BYTES of per-input traffic.  4 is even, so the two cores
    # stay balanced.
    if total_bytes >= 4 * _MIN_SPLIT_BYTES and pl.cdiv(rows, tile_rows) < 4:
        quarter = _round_up(pl.cdiv(rows, 4), sub)
        tile_rows = min(tile_rows, max(sub, quarter))
    return tile_rows


def _run_add_2d(a2: jax.Array, b2: jax.Array) -> jax.Array:
    """Tiled elementwise add of two identically shaped 2-D arrays."""
    rows, cols = a2.shape
    itemsize = jnp.dtype(a2.dtype).itemsize
    sub = _sublane_multiple(a2.dtype)
    # VMEM bytes of one row of one input tile (lanes padded to a 128 multiple).
    row_bytes = _round_up(cols, _LANES) * itemsize
    tile_rows = _pick_tile_rows(rows, row_bytes, sub)
    grid = (pl.cdiv(rows, tile_rows),)
    n_bytes = rows * cols * itemsize

    return pl.pallas_call(
        _add_kernel,
        out_shape=jax.ShapeDtypeStruct((rows, cols), a2.dtype),
        grid=grid,
        in_specs=[
            pl.BlockSpec((tile_rows, cols), lambda i: (i, 0)),
            pl.BlockSpec((tile_rows, cols), lambda i: (i, 0)),
        ],
        out_specs=pl.BlockSpec((tile_rows, cols), lambda i: (i, 0)),
        compiler_params=pltpu.CompilerParams(
            dimension_semantics=("parallel",),
            vmem_limit_bytes=_VMEM_LIMIT_BYTES,
        ),
        cost_estimate=pl.CostEstimate(
            flops=rows * cols,
            transcendentals=0,
            bytes_accessed=3 * n_bytes,
        ),
    )(a2, b2)


def pallas_add(a: jax.Array, b: jax.Array) -> jax.Array:
    """Elementwise add a + b via a Pallas TPU kernel (torch-style broadcasting)."""
    if a.shape != b.shape or a.dtype != b.dtype:
        # Rare general case: match torch's broadcasting / type-promotion semantics.
        dtype = jnp.result_type(a, b)
        shape = jnp.broadcast_shapes(a.shape, b.shape)
        a = jnp.broadcast_to(a, shape).astype(dtype)
        b = jnp.broadcast_to(b, shape).astype(dtype)

    orig_shape = a.shape
    n = a.size
    if n == 0:
        return a + b  # degenerate

    itemsize = jnp.dtype(a.dtype).itemsize
    sub = _sublane_multiple(a.dtype)

    if n % _LANES == 0:
        # Fast path: metadata-only reshape to a lane-dense (rows, 128) slab.
        rows = n // _LANES
        out2 = _run_add_2d(a.reshape(rows, _LANES), b.reshape(rows, _LANES))
        return out2.reshape(orig_shape)

    # Ragged path: collapse to (leading_rows, last_dim) -- still metadata-only
    # for contiguous inputs -- and use a full-last-dim block.  Exactly 3N HBM
    # traffic (no pads, no output slice).
    if a.ndim >= 2:
        cols = orig_shape[-1]
        rows = n // cols
    else:
        cols = n
        rows = 1
    row_bytes = _round_up(cols, _LANES) * itemsize
    if row_bytes * min(sub, rows) <= _TILE_TARGET_BYTES:
        out2 = _run_add_2d(a.reshape(rows, cols), b.reshape(rows, cols))
        return out2.reshape(orig_shape)

    # Last-resort fallback (e.g. a huge ragged rank-1 vector): pad the flat
    # vectors up to a 128 multiple, run the lane-dense path, slice the tail.
    padded = _round_up(n, _LANES)
    prow = padded // _LANES
    a2 = jnp.pad(a.reshape(-1), (0, padded - n)).reshape(prow, _LANES)
    b2 = jnp.pad(b.reshape(-1), (0, padded - n)).reshape(prow, _LANES)
    out2 = _run_add_2d(a2, b2)
    return out2.reshape(-1)[:n].reshape(orig_shape)


def tadd_forward(x):
    """Mirror of tAdd.forward: x is a sequence; returns x[0] + x[1]."""
    return pallas_add(x[0], x[1])


if __name__ == "__main__":
    key = jax.random.PRNGKey(0)
    k0, k1 = jax.random.split(key)

    # 1) Small NCHW shape (fast path, single block).
    shape = (2, 4, 16, 16)
    x0 = jax.random.normal(k0, shape, dtype=jnp.float32)
    x1 = jax.random.normal(k1, shape, dtype=jnp.float32)
    out = tadd_forward((x0, x1))
    jax.block_until_ready(out)
    assert out.shape == shape
    assert jnp.allclose(out, x0 + x1, atol=1e-6, rtol=1e-6)

    # 2) Ragged shape (n % 128 != 0): collapsed (rows, last_dim) path, no pads/slices.
    shape2 = (3, 5, 7, 11)
    y0 = jax.random.normal(k0, shape2, dtype=jnp.float32)
    y1 = jax.random.normal(k1, shape2, dtype=jnp.float32)
    out2 = tadd_forward((y0, y1))
    jax.block_until_ready(out2)
    assert jnp.allclose(out2, y0 + y1, atol=1e-6, rtol=1e-6)

    # 3) 4 MiB-per-input tensor: exercises the forced 4-block split (>= 2 blocks/TC).
    shape3 = (16, 16, 64, 64)
    z0 = jax.random.normal(k0, shape3, dtype=jnp.float32)
    z1 = jax.random.normal(k1, shape3, dtype=jnp.float32)
    out3 = tadd_forward((z0, z1))
    jax.block_until_ready(out3)
    assert jnp.allclose(out3, z0 + z1, atol=1e-6, rtol=1e-6)

    # 4) bf16 (16-sublane packing path).
    w0 = jax.random.normal(k0, shape, dtype=jnp.bfloat16)
    w1 = jax.random.normal(k1, shape, dtype=jnp.bfloat16)
    out4 = tadd_forward((w0, w1))
    jax.block_until_ready(out4)
    ref4 = (w0 + w1).astype(jnp.float32)
    assert jnp.allclose(out4.astype(jnp.float32), ref4, atol=1e-2, rtol=1e-2)

    print("KERNEL_OK")
</pallas_src>

<mosaic_0001>
module attributes {stable_mosaic.version = 11 : i64} {
  func.func @_add_kernel(%arg0: i32, %arg1: memref<16x128xf32, #tpu.memory_space<vmem>>, %arg2: memref<16x128xf32, #tpu.memory_space<vmem>>, %arg3: memref<16x128xf32, #tpu.memory_space<vmem>>) attributes {dimension_semantics = [#tpu.dimension_semantics<parallel>], iteration_bounds = array<i64: 1>, scalar_prefetch = 0 : i64, scratch_operands = 0 : i64, tpu.core_type = #tpu.core_type<tc>, window_params = [{transform_indices = @transform_0, window_bounds = array<i64: 16, 128>}, {transform_indices = @transform_1, window_bounds = array<i64: 16, 128>}, {transform_indices = @transform_2, window_bounds = array<i64: 16, 128>}]} {
    %c0 = arith.constant 0 : index
    %c0_0 = arith.constant 0 : index
    %0 = vector.load %arg1[%c0, %c0_0] : memref<16x128xf32, #tpu.memory_space<vmem>>, vector<16x128xf32>
    %c0_1 = arith.constant 0 : index
    %c0_2 = arith.constant 0 : index
    %1 = vector.load %arg2[%c0_1, %c0_2] : memref<16x128xf32, #tpu.memory_space<vmem>>, vector<16x128xf32>
    %2 = arith.addf %0, %1 : vector<16x128xf32>
    %c0_3 = arith.constant 0 : index
    %c0_4 = arith.constant 0 : index
    %3 = vector.load %arg3[%c0_3, %c0_4] : memref<16x128xf32, #tpu.memory_space<vmem>>, vector<16x128xf32>
    tpu.vector_store %arg3[%c0_3, %c0_4], %2 {strides = array<i32>} : memref<16x128xf32, #tpu.memory_space<vmem>>, vector<16x128xf32>,
    return
  }
  func.func @transform_0(%arg0: i32) -> (i32, i32) {
    %c0_i32 = arith.constant 0 : i32
    %c0_i32_0 = arith.constant 0 : i32
    return %arg0, %c0_i32 : i32, i32
  }
  func.func @transform_1(%arg0: i32) -> (i32, i32) {
    %c0_i32 = arith.constant 0 : i32
    %c0_i32_0 = arith.constant 0 : i32
    return %arg0, %c0_i32 : i32, i32
  }
  func.func @transform_2(%arg0: i32) -> (i32, i32) {
    %c0_i32 = arith.constant 0 : i32
    %c0_i32_0 = arith.constant 0 : i32
    return %arg0, %c0_i32 : i32, i32
  }
}

</mosaic_0001>

<llo_original>
// kernel: tpu_custom_call.1
$region0: #{tpu_custom_call.1}
  #allocation0 [shape = 'u32[]', space=smem, size = 0x4, offset = 0x4, fixed_abs, tag = 'smem constant byte address 0x4 - core index']
  #allocation1 [shape = 'u32[72,128]{1,0:T(1,128)}', space=vmem, size = 0x9000, scoped, tag = 'internal scratch']
  %s0 = inlined_call_operand.hbm [shape: f32[16,128], index: 0, kind: input, shape index: {}]
  %s1 = inlined_call_operand.hbm [shape: f32[16,128], index: 1, kind: input, shape index: {}]
  %s2 = inlined_call_operand.hbm [shape: f32[16,128], index: 2, kind: output, shape index: {}]
  %s3 = sld [smem:[#allocation0]]
  $region26: #{tpu_custom_call.1} parent=0
    _
  %s5 = ssub.s32 1, %s3
  %s6 = scalar_select 0, %s5, %s3
  $region1: #{tpu_custom_call.1} parent=0
    #allocation2 [shape = 'u8[8192]{0}', space=vmem, size = 0x2000, scoped, tag = 'input window, operand 0, single buffered']
    #allocation3 [shape = 's32[1]{0}', space=sflag, size = 0x4, scoped, tag = 'scoped memory for tpu_custom_call.1']
    #allocation4 [shape = 's32[1]{0}', space=sflag, size = 0x4, scoped, tag = 'scoped memory for tpu_custom_call.1']
    #allocation5 [shape = 'u8[8192]{0}', space=vmem, size = 0x2000, scoped, tag = 'input window, operand 1, single buffered']
    #allocation6 [shape = 's32[1]{0}', space=sflag, size = 0x4, scoped, tag = 'scoped memory for tpu_custom_call.1']
    #allocation7 [shape = 'u8[8192]{0}', space=vmem, size = 0x2000, scoped, tag = 'output window, operand 0, single buffered']
    %7 = vsyncpa [#allocation3], 0
    %8 = vsyncpa [#allocation6], 0
    %9 = vsyncpa [#allocation4], 0
    // Predicated region
    $region2: #{tpu_custom_call.1} parent=1 // pred_check
      _
    $region3: #{tpu_custom_call.1} parent=1 // pred_check_branch
      %11 = sbr.rel (0) target = $region5
    $region4: #{tpu_custom_call.1} parent=1 // pred_region
      %13 = vsyncadd [#allocation3], 0
      %s14 = sshll.u32 %s0, 4
      %s15 = int_to_ptr.hbm [resolvable:$true] %s14
      %s16 = sshll.u32 [#allocation2], 4
      %s17 = int_to_ptr.vmem [resolvable:$true] %s16
      %22 = dma.hbm_to_vmem [thread:$0]  %s15, 256, %s17, [#allocation3], 128, 128, 8
    $region5: #{tpu_custom_call.1} parent=1 // pred_fallthru
      _
    // Predicated region
    $region6: #{tpu_custom_call.1} parent=1 // pred_check
      _
    $region7: #{tpu_custom_call.1} parent=1 // pred_check_branch
      %24 = sbr.rel (0) target = $region9
    $region8: #{tpu_custom_call.1} parent=1 // pred_region
      %26 = vsyncadd [#allocation6], 0
      %s27 = sshll.u32 %s1, 4
      %s28 = int_to_ptr.hbm [resolvable:$true] %s27
      %s29 = sshll.u32 [#allocation5], 4
      %s30 = int_to_ptr.vmem [resolvable:$true] %s29
      %35 = dma.hbm_to_vmem [thread:$0]  %s28, 256, %s30, [#allocation6], 128, 128, 8
    $region9: #{tpu_custom_call.1} parent=1 // pred_fallthru
      _
    // Predicated region
    $region10: #{tpu_custom_call.1} parent=1 // pred_check
      _
    $region11: #{tpu_custom_call.1} parent=1 // pred_check_branch
      %37 = sbr.rel (0) target = $region13
    $region12: #{tpu_custom_call.1} parent=1 // pred_region
      %39 = dma.done [#allocation3], 256
    $region13: #{tpu_custom_call.1} parent=1 // pred_fallthru
      _
    // Predicated region
    $region14: #{tpu_custom_call.1} parent=1 // pred_check
      _
    $region15: #{tpu_custom_call.1} parent=1 // pred_check_branch
      %41 = sbr.rel (0) target = $region17
    $region16: #{tpu_custom_call.1} parent=1 // pred_region
      %43 = dma.done [#allocation6], 256
    $region17: #{tpu_custom_call.1} parent=1 // pred_fallthru
      _
    %v44 = vld [vmem:[#allocation2] sm:$0xff]
    %v45 = vld [vmem:[#allocation2 + $0x8] sm:$0xff]
    %v46 = vld [vmem:[#allocation5] sm:$0xff]
    %v47 = vld [vmem:[#allocation5 + $0x8] sm:$0xff]
    %v48 = vadd.f32 %v44, %v46
    %v49 = vadd.f32 %v45, %v47
    %50 = vst [vmem:[#allocation7] sm:$0xff] %v48
    %51 = vst [vmem:[#allocation7 + $0x8] sm:$0xff] %v49
    // Predicated region
    $region18: #{tpu_custom_call.1} parent=1 // pred_check
      _
    $region19: #{tpu_custom_call.1} parent=1 // pred_check_branch
      %53 = sbr.rel (0) target = $region21
    $region20: #{tpu_custom_call.1} parent=1 // pred_region
      %55 = vsyncadd [#allocation4], 0
      %s56 = sshll.u32 [#allocation7], 4
      %s57 = int_to_ptr.vmem [resolvable:$true] %s56
      %s58 = sshll.u32 %s2, 4
      %s59 = int_to_ptr.hbm [resolvable:$true] %s58
      %64 = dma.vmem_to_hbm [thread:$0]  %s57, 256, %s59, [#allocation4], 128, 128, 8
    $region21: #{tpu_custom_call.1} parent=1 // pred_fallthru
      _
    // Predicated region
    $region22: #{tpu_custom_call.1} parent=1 // pred_check
      _
    $region23: #{tpu_custom_call.1} parent=1 // pred_check_branch
      %66 = sbr.rel (0) target = $region25
    $region24: #{tpu_custom_call.1} parent=1 // pred_region
      %68 = dma.done [#allocation4], 256
    $region25: #{tpu_custom_call.1} parent=1 // pred_fallthru
      _
    %69 = vsyncpa [#allocation3], 1
    %70 = vsyncpa [#allocation6], 1
    %71 = vsyncpa [#allocation4], 1

</llo_original>
